<compile_context>
chip_gen: v6e
topology: v6e:2x2x1
jax: 0.10.0
libtpu: 0.0.40
codegen_flags: <defaults>
</compile_context>

<pallas_src>
import math

import jax
import jax.numpy as jnp
from jax.experimental import pallas as pl
from jax.experimental.pallas import tpu as pltpu


def _round_up(x, m):
    return (x + m - 1) // m * m


def _choose_tile_n(n_pad, d, m_pad, w_itemsize, budget_bytes=10 * 1024 * 1024):
    """Largest 128-multiple divisor of n_pad whose double-buffered block
    working set (weights + f32 outputs + bias + resident activations) fits the
    VMEM budget.  Bigger tiles -> fewer grid steps (~0.35us each)."""
    def blk_bytes(tn):
        return (2 * d * tn * w_itemsize       # weight tile, double-buffered
                + 2 * m_pad * tn * 4          # f32 output tile, double-buffered
                + 2 * tn * 4                  # bias tile, double-buffered
                + m_pad * d * w_itemsize)     # activations, resident
    best = 128
    tn = min(n_pad, 4096)
    tn = (tn // 128) * 128
    while tn >= 128:
        if n_pad % tn == 0 and blk_bytes(tn) <= budget_bytes:
            best = tn
            break
        tn -= 128
    return best


# ----------------------------------------------------------------------------
# Pallas kernel: one lane-dense fused matmul+bias for all classifier heads.
#   x : (M_pad, D)       activations (bf16), resident across the grid
#   w : (D, TN) / step   concatenated head weights (bf16), streamed
#   b : (1, TN) / step   concatenated biases (f32), streamed
#   o : (M_pad, TN)      f32 logits tile
# ----------------------------------------------------------------------------
def _fused_heads_kernel(x_ref, w_ref, b_ref, o_ref):
    o_ref[...] = (
        jnp.dot(x_ref[...], w_ref[...], preferred_element_type=jnp.float32)
        + b_ref[...]
    ).astype(o_ref.dtype)


def fused_heads_matmul(x2d, w, b, tile_n):
    """(M_pad, D) @ (D, N_pad) + b -> (M_pad, N_pad) f32, class axis tiled."""
    m, d = x2d.shape
    n_pad = w.shape[1]
    assert n_pad % tile_n == 0
    grid = (n_pad // tile_n,)

    cost = pl.CostEstimate(
        flops=2 * m * d * n_pad,
        transcendentals=0,
        bytes_accessed=(x2d.size * x2d.dtype.itemsize
                        + w.size * w.dtype.itemsize
                        + b.size * b.dtype.itemsize
                        + m * n_pad * 4),
    )

    return pl.pallas_call(
        _fused_heads_kernel,
        out_shape=jax.ShapeDtypeStruct((m, n_pad), jnp.float32),
        grid=grid,
        in_specs=[
            pl.BlockSpec((m, d), lambda j: (0, 0)),        # x: stays resident
            pl.BlockSpec((d, tile_n), lambda j: (0, j)),   # weights: streamed
            pl.BlockSpec((1, tile_n), lambda j: (0, j)),   # bias: streamed
        ],
        out_specs=pl.BlockSpec((m, tile_n), lambda j: (0, j)),
        compiler_params=pltpu.CompilerParams(
            dimension_semantics=("parallel",),             # megacore on v7x
        ),
        cost_estimate=cost,
    )(x2d, w, b)


# ----------------------------------------------------------------------------
# Module: parameter construction + forward
# ----------------------------------------------------------------------------
class AudioVisualCLSHead:
    def __init__(self, num_class, d_model, key, param_dtype=jnp.bfloat16):
        # Mirrors the PyTorch module: include_verb_noun iff num_class is a list.
        self.include_verb_noun = isinstance(num_class, list)
        self.d_model = d_model
        self.param_dtype = param_dtype
        bias_value = -math.log((1 - 0.01) / 0.01)
        bound = 1.0 / math.sqrt(d_model)

        def init_linear(k, out_dim):
            # Deterministic synthetic init; weights stored transposed (D, N)
            # relative to PyTorch's (N, D) so the kernel does x @ W.
            w = jax.random.uniform(k, (d_model, out_dim), jnp.float32,
                                   minval=-bound, maxval=bound)
            b = jnp.full((out_dim,), bias_value, dtype=jnp.float32)
            return w, b

        keys = jax.random.split(key, 4)
        heads = []  # (name, w_f32, b_f32); order == column order in the slab
        if self.include_verb_noun:
            heads.append(("v_verb", *init_linear(keys[0], num_class[0][0])))
            heads.append(("v_noun", *init_linear(keys[1], num_class[0][1])))
            heads.append(("v_act", *init_linear(keys[2], num_class[0][2])))
        else:
            heads.append(("v_act", *init_linear(keys[2], num_class[0])))
        heads.append(("a_act", *init_linear(keys[3], num_class[1])))

        # Per-head params (bf16 weights) kept for the reference implementation.
        self.heads = {name: (w.astype(param_dtype), b) for name, w, b in heads}

        # Column layout of the fused, lane-padded weight slab.
        self.col_slices = {}
        off = 0
        for name, w, _ in heads:
            n = w.shape[1]
            self.col_slices[name] = (off, off + n)
            off += n
        n_tot = off
        n_pad = _round_up(n_tot, 128)
        self.n_pad = n_pad

        w_fused = jnp.concatenate([w for _, w, _ in heads], axis=1)
        b_fused = jnp.concatenate([b for _, _, b in heads], axis=0)
        if n_pad != n_tot:
            w_fused = jnp.pad(w_fused, ((0, 0), (0, n_pad - n_tot)))
            b_fused = jnp.pad(b_fused, ((0, n_pad - n_tot),))
        self.w_fused = w_fused.astype(param_dtype)             # (D, N_pad) bf16
        self.b_fused = b_fused.reshape(1, n_pad)               # (1, N_pad) f32

    def _empty(self, name):
        lo, hi = self.col_slices[name]
        return jnp.zeros((0, hi - lo), dtype=jnp.float32)

    def forward(self, x, num_v_queries, num_a_queries):
        B, S, D = x.shape
        # Same slicing semantics as the PyTorch module (static Python ints).
        audio_start = S - num_a_queries if num_a_queries > 0 else S
        visual_start = audio_start - num_v_queries

        x_vis = x[:, visual_start:audio_start].reshape(-1, D)   # (B*Nv, D)
        x_aud = x[:, audio_start:].reshape(-1, D)               # (B*Na, D)
        mv, ma = x_vis.shape[0], x_aud.shape[0]
        m = mv + ma

        if m == 0:
            # Degenerate zero-query case: skip the kernel entirely.
            vv = self._empty("v_verb") if self.include_verb_noun else None
            vn = self._empty("v_noun") if self.include_verb_noun else None
            return vv, vn, self._empty("v_act"), self._empty("a_act")

        # Stack visual + audio query rows so ONE pallas_call streams the fused
        # weights exactly once; pad M up to the f32 sublane multiple.
        x_all = jnp.concatenate([x_vis, x_aud], axis=0).astype(self.param_dtype)
        m_pad = _round_up(m, 8)
        if m_pad != m:
            x_all = jnp.pad(x_all, ((0, m_pad - m), (0, 0)))

        tile_n = _choose_tile_n(
            self.n_pad, D, m_pad, jnp.dtype(self.param_dtype).itemsize)
        logits = fused_heads_matmul(x_all, self.w_fused, self.b_fused,
                                    tile_n)                     # (m_pad, N_pad)

        vis = logits[:mv]
        aud = logits[mv:m]

        def col(rows, name):
            lo, hi = self.col_slices[name]
            return rows[:, lo:hi]

        v_verb_preds = col(vis, "v_verb") if self.include_verb_noun else None
        v_noun_preds = col(vis, "v_noun") if self.include_verb_noun else None
        v_action_preds = col(vis, "v_act")
        a_action_preds = col(aud, "a_act")
        return v_verb_preds, v_noun_preds, v_action_preds, a_action_preds


# ----------------------------------------------------------------------------
# Reference (plain JAX) for the correctness check — same bf16 weights/inputs,
# f32 accumulation, per-head matmuls.
# ----------------------------------------------------------------------------
def reference_forward(head, x, num_v_queries, num_a_queries):
    B, S, D = x.shape
    audio_start = S - num_a_queries if num_a_queries > 0 else S
    visual_start = audio_start - num_v_queries
    x_vis = x[:, visual_start:audio_start].reshape(-1, D).astype(head.param_dtype)
    x_aud = x[:, audio_start:].reshape(-1, D).astype(head.param_dtype)

    def lin(xx, name):
        w, b = head.heads[name]
        return jnp.dot(xx, w, preferred_element_type=jnp.float32) + b

    vv = lin(x_vis, "v_verb") if head.include_verb_noun else None
    vn = lin(x_vis, "v_noun") if head.include_verb_noun else None
    return vv, vn, lin(x_vis, "v_act"), lin(x_aud, "a_act")


if __name__ == "__main__":
    B = 2
    S = 8                 # total sequence length (queries live at the end)
    d_model = 32
    num_v_queries = 4
    num_a_queries = 2
    # EPIC-style class spec: [[verb, noun, action_visual], action_audio]
    num_class = [[16, 24, 32], 16]

    key = jax.random.PRNGKey(0)
    k_x, k_p1, k_p2 = jax.random.split(key, 3)
    x = jax.random.normal(k_x, (B, S, d_model), dtype=jnp.float32)

    # --- verb/noun path (num_class is a list) -------------------------------
    head = AudioVisualCLSHead(num_class, d_model, k_p1)
    outs = jax.block_until_ready(head.forward(x, num_v_queries, num_a_queries))
    refs = reference_forward(head, x, num_v_queries, num_a_queries)
    expected = [
        (B * num_v_queries, num_class[0][0]),
        (B * num_v_queries, num_class[0][1]),
        (B * num_v_queries, num_class[0][2]),
        (B * num_a_queries, num_class[1]),
    ]
    for name, o, r, es in zip(["v_verb", "v_noun", "v_action", "a_action"],
                              outs, refs, expected):
        assert o is not None and r is not None
        assert o.shape == es, f"{name}: got {o.shape}, expected {es}"
        assert jnp.allclose(o, r, atol=1e-3, rtol=1e-3), f"{name} mismatch"

    # --- action-only path (num_class is a tuple, no verb/noun heads) --------
    head2 = AudioVisualCLSHead((32, 16), d_model, k_p2)
    outs2 = jax.block_until_ready(head2.forward(x, num_v_queries, num_a_queries))
    refs2 = reference_forward(head2, x, num_v_queries, num_a_queries)
    assert outs2[0] is None and outs2[1] is None
    for name, o, r, es in zip(["v_action", "a_action"], outs2[2:], refs2[2:],
                              [(B * num_v_queries, 32), (B * num_a_queries, 16)]):
        assert o.shape == es, f"{name}: got {o.shape}, expected {es}"
        assert jnp.allclose(o, r, atol=1e-3, rtol=1e-3), f"{name} mismatch"

    print("KERNEL_OK")
</pallas_src>

<mosaic_0001>
module attributes {stable_mosaic.version = 11 : i64} {
  func.func @_fused_heads_kernel(%arg0: i32, %arg1: memref<16x32xbf16, #tpu.memory_space<vmem>>, %arg2: memref<32x128xbf16, #tpu.memory_space<vmem>>, %arg3: memref<1x128xf32, #tpu.memory_space<vmem>>, %arg4: memref<16x128xf32, #tpu.memory_space<vmem>>) attributes {dimension_semantics = [#tpu.dimension_semantics<parallel>], iteration_bounds = array<i64: 1>, scalar_prefetch = 0 : i64, scratch_operands = 0 : i64, tpu.core_type = #tpu.core_type<tc>, window_params = [{pipeline_mode = #tpu.pipeline_mode<synchronous>, transform_indices = @transform_0, window_bounds = array<i64: 16, 32>}, {transform_indices = @transform_1, window_bounds = array<i64: 32, 128>}, {transform_indices = @transform_2, window_bounds = array<i64: 1, 128>}, {transform_indices = @transform_3, window_bounds = array<i64: 16, 128>}]} {
    %c0 = arith.constant 0 : index
    %c0_0 = arith.constant 0 : index
    %0 = vector.load %arg1[%c0, %c0_0] : memref<16x32xbf16, #tpu.memory_space<vmem>>, vector<16x32xbf16>
    %c0_1 = arith.constant 0 : index
    %c0_2 = arith.constant 0 : index
    %1 = vector.load %arg2[%c0_1, %c0_2] : memref<32x128xbf16, #tpu.memory_space<vmem>>, vector<32x128xbf16>
    %cst = arith.constant dense<0.000000e+00> : vector<16x128xf32>
    %2 = tpu.matmul %0, %1, %cst {dimension_numbers = #tpu.dot_dimension_numbers<[1], [0], [0], [1], [0, 0, 1, 1], [], []>} : vector<16x32xbf16>, vector<32x128xbf16>, vector<16x128xf32> -> vector<16x128xf32>
    %c0_3 = arith.constant 0 : index
    %c0_4 = arith.constant 0 : index
    %3 = vector.load %arg3[%c0_3, %c0_4] : memref<1x128xf32, #tpu.memory_space<vmem>>, vector<1x128xf32>
    %4 = vector.broadcast %3 : vector<1x128xf32> to vector<16x128xf32>
    %5 = arith.addf %2, %4 : vector<16x128xf32>
    %c0_5 = arith.constant 0 : index
    %c0_6 = arith.constant 0 : index
    %6 = vector.load %arg4[%c0_5, %c0_6] : memref<16x128xf32, #tpu.memory_space<vmem>>, vector<16x128xf32>
    tpu.vector_store %arg4[%c0_5, %c0_6], %5 {strides = array<i32>} : memref<16x128xf32, #tpu.memory_space<vmem>>, vector<16x128xf32>,
    return
  }
  func.func @transform_0(%arg0: i32) -> (i32, i32) {
    %c0_i32 = arith.constant 0 : i32
    %c0_i32_0 = arith.constant 0 : i32
    %c0_i32_1 = arith.constant 0 : i32
    return %c0_i32, %c0_i32_0 : i32, i32
  }
  func.func @transform_1(%arg0: i32) -> (i32, i32) {
    %c0_i32 = arith.constant 0 : i32
    %c0_i32_0 = arith.constant 0 : i32
    return %c0_i32, %arg0 : i32, i32
  }
  func.func @transform_2(%arg0: i32) -> (i32, i32) {
    %c0_i32 = arith.constant 0 : i32
    %c0_i32_0 = arith.constant 0 : i32
    return %c0_i32, %arg0 : i32, i32
  }
  func.func @transform_3(%arg0: i32) -> (i32, i32) {
    %c0_i32 = arith.constant 0 : i32
    %c0_i32_0 = arith.constant 0 : i32
    return %c0_i32, %arg0 : i32, i32
  }
}

</mosaic_0001>

<llo_original>
// kernel: tpu_custom_call.1
$region0: #{tpu_custom_call.1}
  #allocation0 [shape = 'u32[]', space=smem, size = 0x4, offset = 0x4, fixed_abs, tag = 'smem constant byte address 0x4 - core index']
  #allocation1 [shape = 'u32[144,128]{1,0:T(1,128)}', space=vmem, size = 0x12000, scoped, tag = 'internal scratch']
  %s0 = inlined_call_operand.hbm [shape: bf16[16,32], index: 0, kind: input, shape index: {}]
  %s1 = inlined_call_operand.hbm [shape: bf16[32,128], index: 1, kind: input, shape index: {}]
  %s2 = inlined_call_operand.vmem [shape: f32[1,128], index: 2, kind: input, shape index: {}]
  %s3 = inlined_call_operand.hbm [shape: f32[16,128], index: 3, kind: output, shape index: {}]
  %s4 = sld [smem:[#allocation0]]
  $region30: #{tpu_custom_call.1} parent=0
    _
  %s6 = ssub.s32 1, %s4
  %s7 = scalar_select 0, %s6, %s4
  $region1: #{tpu_custom_call.1} parent=0
    #allocation2 [shape = 'u8[4096]{0}', space=vmem, size = 0x1000, scoped, tag = 'input window, operand 0, single buffered']
    #allocation3 [shape = 's32[1]{0}', space=sflag, size = 0x4, scoped, tag = 'scoped memory for tpu_custom_call.1']
    #allocation4 [shape = 's32[1]{0}', space=sflag, size = 0x4, scoped, tag = 'scoped memory for tpu_custom_call.1']
    #allocation5 [shape = 'u8[8192]{0}', space=vmem, size = 0x2000, scoped, tag = 'input window, operand 1, single buffered']
    #allocation6 [shape = 's32[1]{0}', space=sflag, size = 0x4, scoped, tag = 'scoped memory for tpu_custom_call.1']
    #allocation7 [shape = 'u8[8192]{0}', space=vmem, size = 0x2000, scoped, tag = 'output window, operand 0, single buffered']
    %8 = vsyncpa [#allocation3], 0
    %9 = vsyncpa [#allocation6], 0
    %10 = vsyncpa [#allocation4], 0
    // Predicated region
    $region2: #{tpu_custom_call.1} parent=1 // pred_check
      _
    $region3: #{tpu_custom_call.1} parent=1 // pred_check_branch
      %12 = sbr.rel (0) target = $region5
    $region4: #{tpu_custom_call.1} parent=1 // pred_region
      %s14 = ssub.s32 128, 128
      %15 = vsyncadd [#allocation3], %s14
      %s16 = sshll.u32 [#allocation2], 4
      %s17 = int_to_ptr.vmem [resolvable:$true] %s16
      %22 = dma.hbm_to_vmem [thread:$0]  %s0, 128, %s17, [#allocation3], 64, 64, 4
    $region5: #{tpu_custom_call.1} parent=1 // pred_fallthru
      _
    // Predicated region
    $region6: #{tpu_custom_call.1} parent=1 // pred_check
      _
    $region7: #{tpu_custom_call.1} parent=1 // pred_check_branch
      %24 = sbr.rel (0) target = $region9
    $region8: #{tpu_custom_call.1} parent=1 // pred_region
      %s26 = ssub.s32 256, 256
      %27 = vsyncadd [#allocation6], %s26
      %s28 = sshll.u32 [#allocation5], 4
      %s29 = int_to_ptr.vmem [resolvable:$true] %s28
      %34 = dma.hbm_to_vmem [thread:$0]  %s1, 256, %s29, [#allocation6], 64, 64, 4
    $region9: #{tpu_custom_call.1} parent=1 // pred_fallthru
      _
    // Predicated region
    $region10: #{tpu_custom_call.1} parent=1 // pred_check
      _
    $region11: #{tpu_custom_call.1} parent=1 // pred_check_branch
      %36 = sbr.rel (0) target = $region13
    $region12: #{tpu_custom_call.1} parent=1 // pred_region
      _
    $region13: #{tpu_custom_call.1} parent=1 // pred_fallthru
      _
    // Predicated region
    $region14: #{tpu_custom_call.1} parent=1 // pred_check
      _
    $region15: #{tpu_custom_call.1} parent=1 // pred_check_branch
      %38 = sbr.rel (0) target = $region17
    $region16: #{tpu_custom_call.1} parent=1 // pred_region
      %39 = dma.done [#allocation3], 128
    $region17: #{tpu_custom_call.1} parent=1 // pred_fallthru
      _
    // Predicated region
    $region18: #{tpu_custom_call.1} parent=1 // pred_check
      _
    $region19: #{tpu_custom_call.1} parent=1 // pred_check_branch
      %41 = sbr.rel (0) target = $region21
    $region20: #{tpu_custom_call.1} parent=1 // pred_region
      %42 = dma.done [#allocation6], 256
    $region21: #{tpu_custom_call.1} parent=1 // pred_fallthru
      _
    %v44 = vld [vmem:[#allocation2] sm:$0xf]
    %v45 = vld [vmem:[#allocation2 + $0x4] sm:$0xf]
    %v46 = vld [vmem:[#allocation5] sm:$0xf]
    %v47 = vld [vmem:[#allocation5 + $0x4] sm:$0xf]
    %v48 = vld [vmem:[#allocation5 + $0x8] sm:$0xf]
    %v49 = vld [vmem:[#allocation5 + $0xc] sm:$0xf]
    %v50 = vld [vmem:[%s2] sm:$0x1]
    %v52 = vlaneseq
    %v53 = vshrl.u32 %v52, 7
    %v54 = vsub.s32 0, %v53
    %v55 = vrot.slane %v50, %v54
    %v59 = vunpack.c.l.b16 %v44
    %v60 = vunpack.c.l.b16 %v45
    %v61 = vpack.c.b16 %v60, %v59
    %v66 = vunpack.c.l.b16 %v46
    %v67 = vunpack.c.l.b16 %v47
    %v68 = vunpack.c.l.b16 %v48
    %v69 = vunpack.c.l.b16 %v49
    %v70 = vpack.c.b16 %v67, %v66
    %v71 = vpack.c.b16 %v69, %v68
    %vm74 = vcmask 261120
    %v76 = vsel %vm74, %v61, 0
    %78 = vmatprep.subr.bf16.mxu0 0
    %79 = vmatpush1.bf16.msra.mxu0 0
    %80 = vmatprep.subr.bf16.mxu0 0
    %81 = vmatpush1.bf16.msra.mxu0 0
    %82 = vmatprep.subr.bf16.mxu0 0
    %83 = vmatpush1.bf16.msra.mxu0 0
    %84 = vmatprep.subr.bf16.mxu0 0
    %85 = vmatpush1.bf16.msra.mxu0 0
    %86 = vmatprep.subr.bf16.mxu0 0
    %87 = vmatpush1.bf16.msra.mxu0 0
    %88 = vmatprep.subr.bf16.mxu0 0
    %89 = vmatpush1.bf16.msra.mxu0 0
    %90 = vmatprep.subr.bf16.mxu0 0
    %91 = vmatpush1.bf16.msra.mxu0 %v71
    %92 = vmatprep.subr.bf16.mxu0 0
    %93 = vmatpush1.bf16.msra.mxu0 %v70
    %94 = vmatprep.subr.bf16.mxu0 0
    %95 = vmatpush2.bf16.msra.mxu0 0
    %96 = vmatprep.subr.bf16.mxu0 0
    %97 = vmatpush2.bf16.msra.mxu0 0
    %98 = vmatprep.subr.bf16.mxu0 0
    %99 = vmatpush2.bf16.msra.mxu0 0
    %100 = vmatprep.subr.bf16.mxu0 0
    %101 = vmatpush2.bf16.msra.mxu0 0
    %102 = vmatprep.subr.bf16.mxu0 0
    %103 = vmatpush2.bf16.msra.mxu0 0
    %104 = vmatprep.subr.bf16.mxu0 0
    %105 = vmatpush2.bf16.msra.mxu0 0
    %106 = vmatprep.subr.bf16.mxu0 0
    %107 = vmatpush2.bf16.msra.mxu0 0
    %108 = vmatprep.subr.bf16.mxu0 0
    %109 = vmatpush2.bf16.msra.mxu0 0
    %110 = vmatprep.mubr.bf16.mxu0 0
    %111 = vmatmul.mubr.bf16.gmra.mxu0 %v76
    %v112 = vpop.f32.mrf.mxu0
    %v113 = vadd.f32 %v55, %v112
    %v114 = vpop.f32.mrf.mxu0
    %v115 = vpop.f32.mrf.mxu0
    %v116 = vadd.f32 %v55, %v115
    %v117 = vpop.f32.mrf.mxu0
    %118 = vdwg.mxu0
    %119 = vst [vmem:[#allocation7] sm:$0xff] %v113
    %120 = vst [vmem:[#allocation7 + $0x8] sm:$0xff] %v116
    // Predicated region
    $region22: #{tpu_custom_call.1} parent=1 // pred_check
      _
    $region23: #{tpu_custom_call.1} parent=1 // pred_check_branch
      %122 = sbr.rel (0) target = $region25
    $region24: #{tpu_custom_call.1} parent=1 // pred_region
      %s124 = ssub.s32 256, 256
      %125 = vsyncadd [#allocation4], %s124
      %s126 = sshll.u32 [#allocation7], 4
      %s127 = int_to_ptr.vmem [resolvable:$true] %s126
      %132 = dma.vmem_to_hbm [thread:$0]  %s127, 256, %s3, [#allocation4], 128, 128, 8
    $region25: #{tpu_custom_call.1} parent=1 // pred_fallthru
      _
    // Predicated region
    $region26: #{tpu_custom_call.1} parent=1 // pred_check
      _
    $region27: #{tpu_custom_call.1} parent=1 // pred_check_branch
      %134 = sbr.rel (0) target = $region29
    $region28: #{tpu_custom_call.1} parent=1 // pred_region
      %135 = dma.done [#allocation4], 256
    $region29: #{tpu_custom_call.1} parent=1 // pred_fallthru
      _
    %136 = vsyncpa [#allocation3], 1
    %137 = vsyncpa [#allocation6], 1
    %138 = vsyncpa [#allocation4], 1

</llo_original>
